<compile_context>
chip_gen: v7x
topology: tpu7x:2x2x1
jax: 0.10.0
libtpu: 0.0.40
codegen_flags: <defaults>
</compile_context>

<pallas_src>
import functools

import jax
import jax.numpy as jnp
from jax import lax
from jax.experimental import pallas as pl
from jax.experimental.pallas import tpu as pltpu


def _ntxent_lse_kernel(z_row_ref, z_col_ref, lse_ref, m_ref, l_ref, *,
                       exp_dtype):
    """One (row-tile, col-tile) grid step: online log-sum-exp of the logits.

    Inputs are already L2-normalized and scaled by sqrt(1/temperature), so the
    MXU tile is directly the logits tile.  grid = (num_row_blocks,
    num_col_blocks); the column axis is an online-LSE reduction ("arbitrary",
    innermost), the row axis is independent ("parallel").
    """
    r = pl.program_id(0)
    c = pl.program_id(1)
    last_c = pl.num_programs(1) - 1

    tile_r, tile_c = z_row_ref.shape[0], z_col_ref.shape[0]

    # ---- init: first column tile of this row tile --------------------------
    @pl.when(c == 0)
    def _init():
        m_ref[...] = jnp.full_like(m_ref, -jnp.inf)
        l_ref[...] = jnp.zeros_like(l_ref)

    # ---- logits tile on the MXU (no materialized transpose, f32 accumulate)
    s = lax.dot_general(
        z_row_ref[...], z_col_ref[...],
        dimension_numbers=(((1,), (1,)), ((), ())),
        preferred_element_type=jnp.float32,
    )

    # ---- online log-sum-exp update ------------------------------------------
    def _online_update(s_tile):
        m_prev = m_ref[...]
        m_new = jnp.maximum(m_prev, jnp.max(s_tile, axis=1, keepdims=True))
        # exp of the big (TILE_R, TILE_C) tile optionally in bf16 (v6e/v7x);
        # the sum / l state / log stay f32.
        p = jnp.exp((s_tile - m_new).astype(exp_dtype)).astype(jnp.float32)
        l_ref[...] = (l_ref[...] * jnp.exp(m_prev - m_new)
                      + jnp.sum(p, axis=1, keepdims=True))
        m_ref[...] = m_new

    # Only tiles whose row/col ranges overlap the global diagonal contain
    # self-similarity entries; every other tile skips the iota/compare/select.
    row_start = r * tile_r
    col_start = c * tile_c
    has_diag = jnp.logical_and(col_start < row_start + tile_r,
                               col_start + tile_c > row_start)

    @pl.when(has_diag)
    def _diag_tile():
        gi = lax.broadcasted_iota(jnp.int32, s.shape, 0) + row_start
        gj = lax.broadcasted_iota(jnp.int32, s.shape, 1) + col_start
        _online_update(jnp.where(gi == gj, jnp.float32(-1e30), s))

    @pl.when(jnp.logical_not(has_diag))
    def _off_diag_tile():
        _online_update(s)

    # ---- finalize: per-row LSE, stored lane-dense (unmasked 128-lane vst) ---
    @pl.when(c == last_c)
    def _finalize():
        lse = m_ref[...] + jnp.log(l_ref[...])                  # (tile_r, 1)
        lse_ref[...] = jnp.broadcast_to(lse, lse_ref.shape)     # (tile_r, 128)


def _pick_tiles(n):
    """Row tile (large, keeps >=2 blocks for megacore) and column tile (MXU-wide)."""
    if n % 8 != 0:
        # TODO(synk): pad + mask rows/cols for n = 2*batch_size not divisible by 8.
        raise ValueError(
            f"NT-Xent Pallas kernel requires (2*batch_size) % 8 == 0 (got {n}).")
    tile_r = None
    for t in (512, 256, 128, 64, 32, 16, 8):
        if n % t == 0 and n // t >= 2:   # keep >=2 row blocks (v7x megacore)
            tile_r = t
            break
    if tile_r is None:                   # tiny inputs: single row block
        tile_r = n
    tile_c = None
    for t in (256, 128, 64, 32, 16, 8):  # 256 fills the v6e/v7x MXU; falls back
        if n % t == 0:
            tile_c = t
            break
    return tile_r, tile_c


def _vmem_bytes(tile_r, tile_c, d, mm_bytes):
    inputs = 2 * (tile_r + tile_c) * d * mm_bytes   # double-buffered in blocks
    output = 2 * tile_r * 128 * 4                   # double-buffered out block
    state = 2 * tile_r * 512                        # m/l (lane-padded (t,1) f32)
    s_tmp = 3 * tile_r * tile_c * 4                 # s tile + exp temporaries
    return inputs + output + state + s_tmp


def ntxent_loss(zi, zj, *, temperature, matmul_dtype=jnp.bfloat16,
                exp_dtype=jnp.float32, tile_r=None, tile_c=None):
    assert zi.shape == zj.shape and zi.ndim == 2
    B, D = zi.shape
    n = 2 * B

    auto_r, auto_c = _pick_tiles(n)
    tile_r = auto_r if tile_r is None else tile_r
    tile_c = auto_c if tile_c is None else tile_c

    mm_bytes = jnp.dtype(matmul_dtype).itemsize
    VMEM_CAP = 48 * 1024 * 1024          # < 64 MiB so the plan also fits v7x
    while _vmem_bytes(tile_r, tile_c, D, mm_bytes) > (VMEM_CAP * 3) // 4 and tile_r > 8:
        tile_r //= 2
    vmem_needed = _vmem_bytes(tile_r, tile_c, D, mm_bytes)
    vmem_limit = int(min(VMEM_CAP, max(2 * vmem_needed, 16 * 1024 * 1024)))

    num_r = n // tile_r
    num_c = n // tile_c

    inv_t = jnp.float32(1.0 / float(temperature))

    # ---- one-time prologue in plain JAX (HBM) --------------------------------
    # F.normalize(dim=1) semantics: x / max(||x||, 1e-12) == x * rsqrt(max(||x||^2, 1e-24))
    z = jnp.concatenate([zi, zj], axis=0).astype(jnp.float32)
    ssq = jnp.sum(z * z, axis=1, keepdims=True)
    z_hat = z * lax.rsqrt(jnp.maximum(ssq, jnp.float32(1e-24)))
    # Fold sqrt(1/temperature) into BOTH matmul operands (single streamed array)
    # so (sqrt(it)*z_i) . (sqrt(it)*z_j) == it * z_i . z_j are the final logits.
    z_mm = (z_hat * jnp.sqrt(inv_t)).astype(matmul_dtype)

    # Positive logits in f32, outside the kernel: partner of row i is (i+B) % n.
    pos = jnp.sum(z_hat * jnp.roll(z_hat, -B, axis=0), axis=1) * inv_t   # (n,)

    kernel = functools.partial(_ntxent_lse_kernel, exp_dtype=exp_dtype)

    lse_wide = pl.pallas_call(
        kernel,
        out_shape=jax.ShapeDtypeStruct((n, 128), jnp.float32),
        grid=(num_r, num_c),
        in_specs=[
            pl.BlockSpec((tile_r, D), lambda r, c: (r, 0)),   # query rows
            pl.BlockSpec((tile_c, D), lambda r, c: (c, 0)),   # key rows (columns of sim)
        ],
        out_specs=pl.BlockSpec((tile_r, 128), lambda r, c: (r, 0)),
        scratch_shapes=[
            pltpu.VMEM((tile_r, 1), jnp.float32),   # running max  m_i
            pltpu.VMEM((tile_r, 1), jnp.float32),   # running sum  l_i
        ],
        compiler_params=pltpu.CompilerParams(
            dimension_semantics=("parallel", "arbitrary"),
            vmem_limit_bytes=vmem_limit,
        ),
    )(z_mm, z_mm)

    lse = lse_wide[:, 0]
    return jnp.sum(lse - pos) / jnp.float32(n)


def _ntxent_ref(zi, zj, temperature):
    # pure-JAX reference (mirrors the PyTorch module exactly: diagonal removed,
    # label (i+B) % 2B, CrossEntropyLoss mean reduction)
    z = jnp.concatenate([zi, zj], axis=0).astype(jnp.float32)
    z = z / jnp.maximum(jnp.linalg.norm(z, axis=1, keepdims=True), 1e-12)
    n = z.shape[0]
    B = n // 2
    sim = (z @ z.T) / temperature
    masked = jnp.where(jnp.eye(n, dtype=bool), -jnp.inf, sim)
    lse = jax.scipy.special.logsumexp(masked, axis=1)
    pos = sim[jnp.arange(n), (jnp.arange(n) + B) % n]
    return jnp.mean(lse - pos)


if __name__ == "__main__":
    batch_size = 8
    feat_dim = 128
    temperature = 0.5

    key = jax.random.PRNGKey(0)
    ki, kj = jax.random.split(key)
    zi = jax.random.normal(ki, (batch_size, feat_dim), dtype=jnp.float32)
    zj = jax.random.normal(kj, (batch_size, feat_dim), dtype=jnp.float32)

    # f32 MXU path: verification only (tight check vs. reference).
    loss_f32 = jax.block_until_ready(
        ntxent_loss(zi, zj, temperature=temperature, matmul_dtype=jnp.float32))
    # Default / production path: pre-normalized bf16 operands, f32 accumulation.
    loss_bf16 = jax.block_until_ready(
        ntxent_loss(zi, zj, temperature=temperature))
    ref = jax.block_until_ready(_ntxent_ref(zi, zj, temperature))

    assert jnp.isfinite(loss_f32) and jnp.isfinite(loss_bf16), "loss is not finite"
    assert jnp.allclose(loss_f32, ref, atol=2e-3, rtol=2e-3), (loss_f32, ref)
    assert jnp.allclose(loss_bf16, ref, atol=2e-2, rtol=2e-2), (loss_bf16, ref)
    print("KERNEL_OK")
</pallas_src>

<mosaic_0001>
module attributes {stable_mosaic.version = 11 : i64} {
  func.func @_ntxent_lse_kernel(%arg0: i32, %arg1: i32, %arg2: memref<8x128xf32, #tpu.memory_space<vmem>>, %arg3: memref<16x128xf32, #tpu.memory_space<vmem>>, %arg4: memref<8x128xf32, #tpu.memory_space<vmem>>, %arg5: memref<8x1xf32, #tpu.memory_space<vmem>>, %arg6: memref<8x1xf32, #tpu.memory_space<vmem>>) attributes {dimension_semantics = [#tpu.dimension_semantics<parallel>, #tpu.dimension_semantics<arbitrary>], iteration_bounds = array<i64: 2, 1>, scalar_prefetch = 0 : i64, scratch_operands = 2 : i64, tpu.core_type = #tpu.core_type<tc>, window_params = [{transform_indices = @transform_0, window_bounds = array<i64: 8, 128>}, {transform_indices = @transform_1, window_bounds = array<i64: 16, 128>}, {transform_indices = @transform_2, window_bounds = array<i64: 8, 128>}]} {
    %c0_i32 = arith.constant 0 : i32
    %0 = arith.cmpi eq, %arg1, %c0_i32 : i32
    %1 = arith.extui %0 : i1 to i32
    %c0_i32_0 = arith.constant 0 : i32
    %2 = arith.cmpi ne, %1, %c0_i32_0 : i32
    scf.if %2 {
      %cst_10 = arith.constant 0xFF800000 : f32
      %21 = vector.broadcast %cst_10 : f32 to vector<8x1xf32>
      %c0_11 = arith.constant 0 : index
      %c0_12 = arith.constant 0 : index
      %22 = vector.load %arg5[%c0_11, %c0_12] : memref<8x1xf32, #tpu.memory_space<vmem>>, vector<8x1xf32>
      tpu.vector_store %arg5[%c0_11, %c0_12], %21 {strides = array<i32>} : memref<8x1xf32, #tpu.memory_space<vmem>>, vector<8x1xf32>,
      %cst_13 = arith.constant 0.000000e+00 : f32
      %23 = vector.broadcast %cst_13 : f32 to vector<8x1xf32>
      %c0_14 = arith.constant 0 : index
      %c0_15 = arith.constant 0 : index
      %24 = vector.load %arg6[%c0_14, %c0_15] : memref<8x1xf32, #tpu.memory_space<vmem>>, vector<8x1xf32>
      tpu.vector_store %arg6[%c0_14, %c0_15], %23 {strides = array<i32>} : memref<8x1xf32, #tpu.memory_space<vmem>>, vector<8x1xf32>,
    } else {
    }
    %c0 = arith.constant 0 : index
    %c0_1 = arith.constant 0 : index
    %3 = vector.load %arg2[%c0, %c0_1] : memref<8x128xf32, #tpu.memory_space<vmem>>, vector<8x128xf32>
    %c0_2 = arith.constant 0 : index
    %c0_3 = arith.constant 0 : index
    %4 = vector.load %arg3[%c0_2, %c0_3] : memref<16x128xf32, #tpu.memory_space<vmem>>, vector<16x128xf32>
    %cst = arith.constant dense<0.000000e+00> : vector<8x16xf32>
    %5 = tpu.matmul %3, %4, %cst {dimension_numbers = #tpu.dot_dimension_numbers<[1], [1], [0], [0], [0, 0, 1, 0], [], []>} : vector<8x128xf32>, vector<16x128xf32>, vector<8x16xf32> -> vector<8x16xf32>
    %c8_i32 = arith.constant 8 : i32
    %6 = arith.muli %arg0, %c8_i32 : i32
    %c16_i32 = arith.constant 16 : i32
    %7 = arith.muli %arg1, %c16_i32 : i32
    %c8_i32_4 = arith.constant 8 : i32
    %8 = arith.addi %6, %c8_i32_4 : i32
    %9 = arith.cmpi slt, %7, %8 : i32
    %c16_i32_5 = arith.constant 16 : i32
    %10 = arith.addi %7, %c16_i32_5 : i32
    %11 = arith.cmpi sgt, %10, %6 : i32
    %12 = arith.andi %9, %11 : i1
    %13 = arith.extui %12 : i1 to i32
    %c0_i32_6 = arith.constant 0 : i32
    %14 = arith.cmpi ne, %13, %c0_i32_6 : i32
    scf.if %14 {
      %21 = tpu.iota {dimensions = array<i32: 0>} : vector<8x16xi32>
      %22 = vector.broadcast %6 : i32 to vector<8x16xi32>
      %23 = arith.addi %21, %22 : vector<8x16xi32>
      %24 = tpu.iota {dimensions = array<i32: 1>} : vector<8x16xi32>
      %25 = vector.broadcast %7 : i32 to vector<8x16xi32>
      %26 = arith.addi %24, %25 : vector<8x16xi32>
      %27 = arith.cmpi eq, %23, %26 : vector<8x16xi32>
      %cst_10 = arith.constant -1.000000e+30 : f32
      %28 = vector.broadcast %cst_10 : f32 to vector<8x16xf32>
      %29 = arith.select %27, %28, %5 : vector<8x16xi1>, vector<8x16xf32>
      %c0_11 = arith.constant 0 : index
      %c0_12 = arith.constant 0 : index
      %30 = vector.load %arg5[%c0_11, %c0_12] : memref<8x1xf32, #tpu.memory_space<vmem>>, vector<8x1xf32>
      %cst_13 = arith.constant dense<0xFF800000> : vector<8xf32>
      %31 = vector.multi_reduction <maximumf>, %29, %cst_13 [1] : vector<8x16xf32> to vector<8xf32>
      %32 = vector.shape_cast %31 : vector<8xf32> to vector<8x1xf32>
      %33 = arith.maximumf %30, %32 : vector<8x1xf32>
      %34 = vector.broadcast %33 : vector<8x1xf32> to vector<8x16xf32>
      %35 = arith.subf %29, %34 : vector<8x16xf32>
      %36 = math.exp %35 : vector<8x16xf32>
      %c0_14 = arith.constant 0 : index
      %c0_15 = arith.constant 0 : index
      %37 = vector.load %arg6[%c0_14, %c0_15] : memref<8x1xf32, #tpu.memory_space<vmem>>, vector<8x1xf32>
      %38 = arith.subf %30, %33 : vector<8x1xf32>
      %39 = math.exp %38 : vector<8x1xf32>
      %40 = arith.mulf %37, %39 : vector<8x1xf32>
      %cst_16 = arith.constant dense<0.000000e+00> : vector<8xf32>
      %41 = vector.multi_reduction <add>, %36, %cst_16 [1] : vector<8x16xf32> to vector<8xf32>
      %42 = vector.shape_cast %41 : vector<8xf32> to vector<8x1xf32>
      %43 = arith.addf %40, %42 : vector<8x1xf32>
      %c0_17 = arith.constant 0 : index
      %c0_18 = arith.constant 0 : index
      %44 = vector.load %arg6[%c0_17, %c0_18] : memref<8x1xf32, #tpu.memory_space<vmem>>, vector<8x1xf32>
      tpu.vector_store %arg6[%c0_17, %c0_18], %43 {strides = array<i32>} : memref<8x1xf32, #tpu.memory_space<vmem>>, vector<8x1xf32>,
      %c0_19 = arith.constant 0 : index
      %c0_20 = arith.constant 0 : index
      %45 = vector.load %arg5[%c0_19, %c0_20] : memref<8x1xf32, #tpu.memory_space<vmem>>, vector<8x1xf32>
      tpu.vector_store %arg5[%c0_19, %c0_20], %33 {strides = array<i32>} : memref<8x1xf32, #tpu.memory_space<vmem>>, vector<8x1xf32>,
    } else {
    }
    %true = arith.constant true
    %15 = arith.xori %12, %true : i1
    %16 = arith.extui %15 : i1 to i32
    %c0_i32_7 = arith.constant 0 : i32
    %17 = arith.cmpi ne, %16, %c0_i32_7 : i32
    scf.if %17 {
      %c0_10 = arith.constant 0 : index
      %c0_11 = arith.constant 0 : index
      %21 = vector.load %arg5[%c0_10, %c0_11] : memref<8x1xf32, #tpu.memory_space<vmem>>, vector<8x1xf32>
      %cst_12 = arith.constant dense<0xFF800000> : vector<8xf32>
      %22 = vector.multi_reduction <maximumf>, %5, %cst_12 [1] : vector<8x16xf32> to vector<8xf32>
      %23 = vector.shape_cast %22 : vector<8xf32> to vector<8x1xf32>
      %24 = arith.maximumf %21, %23 : vector<8x1xf32>
      %25 = vector.broadcast %24 : vector<8x1xf32> to vector<8x16xf32>
      %26 = arith.subf %5, %25 : vector<8x16xf32>
      %27 = math.exp %26 : vector<8x16xf32>
      %c0_13 = arith.constant 0 : index
      %c0_14 = arith.constant 0 : index
      %28 = vector.load %arg6[%c0_13, %c0_14] : memref<8x1xf32, #tpu.memory_space<vmem>>, vector<8x1xf32>
      %29 = arith.subf %21, %24 : vector<8x1xf32>
      %30 = math.exp %29 : vector<8x1xf32>
      %31 = arith.mulf %28, %30 : vector<8x1xf32>
      %cst_15 = arith.constant dense<0.000000e+00> : vector<8xf32>
      %32 = vector.multi_reduction <add>, %27, %cst_15 [1] : vector<8x16xf32> to vector<8xf32>
      %33 = vector.shape_cast %32 : vector<8xf32> to vector<8x1xf32>
      %34 = arith.addf %31, %33 : vector<8x1xf32>
      %c0_16 = arith.constant 0 : index
      %c0_17 = arith.constant 0 : index
      %35 = vector.load %arg6[%c0_16, %c0_17] : memref<8x1xf32, #tpu.memory_space<vmem>>, vector<8x1xf32>
      tpu.vector_store %arg6[%c0_16, %c0_17], %34 {strides = array<i32>} : memref<8x1xf32, #tpu.memory_space<vmem>>, vector<8x1xf32>,
      %c0_18 = arith.constant 0 : index
      %c0_19 = arith.constant 0 : index
      %36 = vector.load %arg5[%c0_18, %c0_19] : memref<8x1xf32, #tpu.memory_space<vmem>>, vector<8x1xf32>
      tpu.vector_store %arg5[%c0_18, %c0_19], %24 {strides = array<i32>} : memref<8x1xf32, #tpu.memory_space<vmem>>, vector<8x1xf32>,
    } else {
    }
    %c0_i32_8 = arith.constant 0 : i32
    %18 = arith.cmpi eq, %arg1, %c0_i32_8 : i32
    %19 = arith.extui %18 : i1 to i32
    %c0_i32_9 = arith.constant 0 : i32
    %20 = arith.cmpi ne, %19, %c0_i32_9 : i32
    scf.if %20 {
      %c0_10 = arith.constant 0 : index
      %c0_11 = arith.constant 0 : index
      %21 = vector.load %arg5[%c0_10, %c0_11] : memref<8x1xf32, #tpu.memory_space<vmem>>, vector<8x1xf32>
      %c0_12 = arith.constant 0 : index
      %c0_13 = arith.constant 0 : index
      %22 = vector.load %arg6[%c0_12, %c0_13] : memref<8x1xf32, #tpu.memory_space<vmem>>, vector<8x1xf32>
      %23 = math.log %22 : vector<8x1xf32>
      %24 = arith.addf %21, %23 : vector<8x1xf32>
      %25 = vector.shape_cast %24 : vector<8x1xf32> to vector<8x1xf32>
      %26 = vector.broadcast %25 : vector<8x1xf32> to vector<8x128xf32>
      %c0_14 = arith.constant 0 : index
      %c0_15 = arith.constant 0 : index
      %27 = vector.load %arg4[%c0_14, %c0_15] : memref<8x128xf32, #tpu.memory_space<vmem>>, vector<8x128xf32>
      tpu.vector_store %arg4[%c0_14, %c0_15], %26 {strides = array<i32>} : memref<8x128xf32, #tpu.memory_space<vmem>>, vector<8x128xf32>,
    } else {
    }
    return
  }
  func.func @transform_0(%arg0: i32, %arg1: i32) -> (i32, i32) {
    %c0_i32 = arith.constant 0 : i32
    %c0_i32_0 = arith.constant 0 : i32
    return %arg0, %c0_i32 : i32, i32
  }
  func.func @transform_1(%arg0: i32, %arg1: i32) -> (i32, i32) {
    %c0_i32 = arith.constant 0 : i32
    %c0_i32_0 = arith.constant 0 : i32
    return %arg1, %c0_i32 : i32, i32
  }
  func.func @transform_2(%arg0: i32, %arg1: i32) -> (i32, i32) {
    %c0_i32 = arith.constant 0 : i32
    %c0_i32_0 = arith.constant 0 : i32
    return %arg0, %c0_i32 : i32, i32
  }
}

</mosaic_0001>

<llo_original>
// kernel: tpu_custom_call.1
$region0: #{tpu_custom_call.1}
  #allocation0 [shape = 'u32[]', space=smem, size = 0x4, offset = 0x4, fixed_abs, tag = 'smem constant byte address 0x4 - core index']
  #allocation1 [shape = 'u32[144,128]{1,0:T(1,128)}', space=vmem, size = 0x12000, scoped, tag = 'internal scratch']
  #allocation2 [shape = 'f32[8,1]{1,0:T(8,128)}', space=vmem, size = 0x1000, scoped, tag = 'scratch operand']
  #allocation3 [shape = 'f32[8,1]{1,0:T(8,128)}', space=vmem, size = 0x1000, scoped, tag = 'scratch operand']
  %s0 = inlined_call_operand.hbm [shape: f32[16,128], index: 0, kind: input, shape index: {}]
  %s1 = inlined_call_operand.hbm [shape: f32[16,128], index: 1, kind: input, shape index: {}]
  %s2 = inlined_call_operand.hbm [shape: f32[16,128], index: 2, kind: output, shape index: {}]
  %s3 = sld [smem:[#allocation0]]
  $region65: #{tpu_custom_call.1} parent=0
    _
  %s5 = ssub.s32 1, %s3
  %s6 = scalar_select 0, %s5, %s3
  $region1: #{tpu_custom_call.1} parent=0
    #allocation4 [shape = 'u8[8192]{0}', space=vmem, size = 0x2000, scoped, tag = 'input window, operand 0']
    #allocation5 [shape = 's32[2]{0}', space=sflag, size = 0x8, scoped, tag = 'scoped memory for tpu_custom_call.1']
    #allocation6 [shape = 's32[2]{0}', space=sflag, size = 0x8, scoped, tag = 'scoped memory for tpu_custom_call.1']
    #allocation7 [shape = 'u8[8192]{0}', space=vmem, size = 0x2000, scoped, tag = 'input window, operand 1, single buffered']
    #allocation8 [shape = 's32[1]{0}', space=sflag, size = 0x4, scoped, tag = 'scoped memory for tpu_custom_call.1']
    #allocation9 [shape = 'u8[8192]{0}', space=vmem, size = 0x2000, scoped, tag = 'output window, operand 0']
    %7 = vsyncpa [#allocation5], 0
    %s8 = scalar_lea.sflag [#allocation5], 1
    %9 = vsyncpa %s8, 0
    %10 = vsyncpa [#allocation8], 0
    %11 = vsyncpa [#allocation6], 0
    %s12 = scalar_lea.sflag [#allocation6], 1
    %13 = vsyncpa %s12, 0
    loop: start=0, step=1, limit=4
    $region2: #{tpu_custom_call.1} parent=1 // loop_pre_header
      _
    $region3: #{tpu_custom_call.1} parent=1 // loop_header
      %s15 = sphi 0, %s19
      %p16 = scmp.ge.s32.totalorder %s15, 4
      %s22 = sphi 0, %s34
      %s23 = sphi 0, %s30
      %s24 = sphi 0, %s22
      %s25 = sphi 0, %s23
      %s26 = sphi 0, %s24
      %s27 = sphi 0, %s25
      %s37 = sphi 0, %s39
      %s40 = sphi 0, %s37
      %s41 = sphi 0, %s40
      %s57 = sphi 0, %s41
      %s63 = sphi 0, %s65
      %s66 = sphi 0, %s63
      %s67 = sphi 0, %s66
      %s83 = sphi 0, %s67
      %s89 = sphi 0, %s91
      %s92 = sphi 0, %s89
      %s93 = sphi 0, %s92
      %s109 = sphi 0, %s93
    $region4: #{tpu_custom_call.1} parent=1 // loop_header_branch
      %18 = sbr.rel (%p16) target = $region8
    $region5: #{tpu_custom_call.1} parent=1 // loop_body
      %s20 = ssub.s32 %s15, 1
      %s21 = ssub.s32 %s15, 2
      %s28 = sadd.s32 1, %s23
      %p29 = scmp.ge.s32.totalorder %s28, 1
      %s30 = scalar_select %p29, 0, %s28
      %s31 = sadd.s32 1, %s22
      %s32 = scalar_select %p29, %s31, %s22
      %p33 = scmp.ge.s32.totalorder %s32, 2
      %s34 = scalar_select %p33, 0, %s32
      %s35 = ssub.s32 %s22, %s34
      %p36 = scmp.eq.s32.totalorder %s35, 0
      %s38 = sadd.s32 %s37, 1
      %s39 = scalar_select %p36, %s37, %s38
      %p42 = pneg %p36
      %p43 = scmp.eq.s32.totalorder %s15, 1
      %p44 = por %p42, %p43
      %p45 = scmp.ne.s32.totalorder %s37, %s40
      %p46 = scmp.eq.s32.totalorder %s15, 0
      %p47 = por %p45, %p46
      %p48 = scmp.ne.s32.totalorder %s37, %s40
      %p49 = scmp.eq.s32.totalorder %s20, 1
      %p50 = por %p48, %p49
      %p51 = scmp.ne.s32.totalorder %s40, %s41
      %p52 = scmp.eq.s32.totalorder %s20, 0
      %p53 = por %p51, %p52
      %p54 = scmp.ne.s32.totalorder %s40, %s41
      %p55 = scmp.eq.s32.totalorder %s21, 1
      %p56 = por %p54, %p55
      %p58 = scmp.ne.s32.totalorder %s41, %s57
      %p59 = scmp.eq.s32.totalorder %s21, 0
      %p60 = por %p58, %p59
      %s61 = ssub.s32 %s23, %s30
      %p62 = scmp.eq.s32.totalorder %s61, 0
      %s64 = sadd.s32 %s63, 1
      %s65 = scalar_select %p62, %s63, %s64
      %p68 = pneg %p62
      %p69 = scmp.eq.s32.totalorder %s15, 1
      %p70 = por %p68, %p69
      %p71 = scmp.ne.s32.totalorder %s63, %s66
      %p72 = scmp.eq.s32.totalorder %s15, 0
      %p73 = por %p71, %p72
      %p74 = scmp.ne.s32.totalorder %s63, %s66
      %p75 = scmp.eq.s32.totalorder %s20, 1
      %p76 = por %p74, %p75
      %p77 = scmp.ne.s32.totalorder %s66, %s67
      %p78 = scmp.eq.s32.totalorder %s20, 0
      %p79 = por %p77, %p78
      %p80 = scmp.ne.s32.totalorder %s66, %s67
      %p81 = scmp.eq.s32.totalorder %s21, 1
      %p82 = por %p80, %p81
      %p84 = scmp.ne.s32.totalorder %s67, %s83
      %p85 = scmp.eq.s32.totalorder %s21, 0
      %p86 = por %p84, %p85
      %s87 = ssub.s32 %s22, %s34
      %p88 = scmp.eq.s32.totalorder %s87, 0
      %s90 = sadd.s32 %s89, 1
      %s91 = scalar_select %p88, %s89, %s90
      %p94 = pneg %p88
      %p95 = scmp.eq.s32.totalorder %s15, 1
      %p96 = por %p94, %p95
      %p97 = scmp.ne.s32.totalorder %s89, %s92
      %p98 = scmp.eq.s32.totalorder %s15, 0
      %p99 = por %p97, %p98
      %p100 = scmp.ne.s32.totalorder %s89, %s92
      %p101 = scmp.eq.s32.totalorder %s20, 1
      %p102 = por %p100, %p101
      %p103 = scmp.ne.s32.totalorder %s92, %s93
      %p104 = scmp.eq.s32.totalorder %s20, 0
      %p105 = por %p103, %p104
      %p106 = scmp.ne.s32.totalorder %s92, %s93
      %p107 = scmp.eq.s32.totalorder %s21, 1
      %p108 = por %p106, %p107
      %p110 = scmp.ne.s32.totalorder %s93, %s109
      %p111 = scmp.eq.s32.totalorder %s21, 0
      %p112 = por %p110, %p111
      %p113 = scmp.le.s32.totalorder 1, %s15
      %p114 = scmp.lt.s32.totalorder %s15, 3
      %p115 = pnand %p113, %p114
      %p116 = pneg %p115
      // Predicated region
      $region9: #{tpu_custom_call.1} parent=5 // pred_check
        _
      $region10: #{tpu_custom_call.1} parent=5 // pred_check_branch
        %118 = sbr.rel (%p115) target = $region12
      $region11: #{tpu_custom_call.1} parent=5 // pred_region
        %s119 = ssub.s32 %s15, 1
        // Predicated region
        $region13: #{tpu_custom_call.1} parent=11 // pred_check
          %p120 = pneg %p79
        $region14: #{tpu_custom_call.1} parent=11 // pred_check_branch
          %122 = sbr.rel (%p120) target = $region16
        $region15: #{tpu_custom_call.1} parent=11 // pred_region
          %s123 = smul.u32 2, %s25
          %s125 = ssub.s32 256, 256
          %126 = vsyncadd [#allocation8], %s125
          %s127 = smul.addr %s123, 128
          %s128 = scalar_lea.hbm %s1, %s127
          %s129 = sshll.u32 [#allocation7], 4
          %s130 = int_to_ptr.vmem [resolvable:$true] %s129
          %135 = dma.hbm_to_vmem [thread:$0]  %s128, 256, %s130, [#allocation8], 128, 128, 8
        $region16: #{tpu_custom_call.1} parent=11 // pred_fallthru
          _
      $region12: #{tpu_custom_call.1} parent=5 // pred_fallthru
        _
      %p136 = scmp.lt.s32.totalorder %s15, 2
      // Predicated region
      $region17: #{tpu_custom_call.1} parent=5 // pred_check
        %p137 = pneg %p136
      $region18: #{tpu_custom_call.1} parent=5 // pred_check_branch
        %139 = sbr.rel (%p137) target = $region20
      $region19: #{tpu_custom_call.1} parent=5 // pred_region
        // Predicated region
        $region21: #{tpu_custom_call.1} parent=19 // pred_check
          %p140 = pneg %p47
        $region22: #{tpu_custom_call.1} parent=19 // pred_check_branch
          %142 = sbr.rel (%p140) target = $region24
        $region23: #{tpu_custom_call.1} parent=19 // pred_region
          %s143 = sand.u32 %s37, 1
          %s144 = scalar_lea.sflag [#allocation5], %s143
          %s145 = sand.u32 %s37, 1
          %s146 = smul.addr %s145, 8
          %s147 = scalar_lea.vmem [#allocation4], %s146
          %s149 = ssub.s32 128, 128
          %150 = vsyncadd %s144, %s149
          %s151 = smul.addr %s22, 128
          %s152 = scalar_lea.hbm %s0, %s151
          %s154 = sshll.u32 %s147, 4
          %s155 = int_to_ptr.vmem [resolvable:$true] %s154
          %157 = dma.hbm_to_vmem [thread:$0]  %s152, 128, %s155, %s144
        $region24: #{tpu_custom_call.1} parent=19 // pred_fallthru
          _
      $region20: #{tpu_custom_call.1} parent=5 // pred_fallthru
        _
      %p158 = scmp.le.s32.totalorder 1, %s15
      %p159 = scmp.lt.s32.totalorder %s15, 3
      %p160 = pnand %p158, %p159
      %p161 = pneg %p160
      // Predicated region
      $region25: #{tpu_custom_call.1} parent=5 // pred_check
        _
      $region26: #{tpu_custom_call.1} parent=5 // pred_check_branch
        %163 = sbr.rel (%p160) target = $region28
      $region27: #{tpu_custom_call.1} parent=5 // pred_region
        %s164 = ssub.s32 %s15, 1
        %s165 = sand.u32 %s40, 1
        %s166 = scalar_lea.sflag [#allocation5], %s165
        %s167 = sand.u32 %s40, 1
        %s168 = smul.addr %s167, 8
        %s169 = scalar_lea.vmem [#allocation4], %s168
        // Predicated region
        $region29: #{tpu_custom_call.1} parent=27 // pred_check
          %p170 = pneg %p53
        $region30: #{tpu_custom_call.1} parent=27 // pred_check_branch
          %172 = sbr.rel (%p170) target = $region32
        $region31: #{tpu_custom_call.1} parent=27 // pred_region
          %173 = dma.done %s166, 128
        $region32: #{tpu_custom_call.1} parent=27 // pred_fallthru
          _
        // Predicated region
        $region33: #{tpu_custom_call.1} parent=27 // pred_check
          %p174 = pneg %p79
        $region34: #{tpu_custom_call.1} parent=27 // pred_check_branch
          %176 = sbr.rel (%p174) target = $region36
        $region35: #{tpu_custom_call.1} parent=27 // pred_region
          %177 = dma.done [#allocation8], 256
        $region36: #{tpu_custom_call.1} parent=27 // pred_fallthru
          _
        %s178 = sand.u32 %s40, 1
        %s179 = scalar_lea.sflag [#allocation5], %s178
        %s180 = sand.u32 %s40, 1
        %s181 = smul.addr %s180, 8
        %s182 = scalar_lea.vmem [#allocation4], %s181
        %p183 = pneg %p53
        %p184 = pneg %p50
        %p185 = pneg %p79
        %p186 = pneg %p76
        %p187 = pneg %p105
        %p188 = pneg %p102
        %s189 = sand.u32 %s92, 1
        %s190 = scalar_lea.sflag [#allocation6], %s189
        %s191 = sand.u32 %s92, 1
        %s192 = smul.addr %s191, 8
        %s193 = scalar_lea.vmem [#allocation9], %s192
        %s194 = smul.u32 2, %s25
        %p195 = scmp.eq.s32.totalorder %s25, 0
        // Predicated region
        $region37: #{tpu_custom_call.1} parent=27 // pred_check
          %p196 = pneg %p195
        $region38: #{tpu_custom_call.1} parent=27 // pred_check_branch
          %198 = sbr.rel (%p196) target = $region40
        $region39: #{tpu_custom_call.1} parent=27 // pred_region
          %vm199 = vcmask 7168
          %200 = vst.msk [vmem:[#allocation2] sm:$0xff] %vm199, -inf
          %201 = vst.msk [vmem:[#allocation3] sm:$0xff] %vm199, 0.0
        $region40: #{tpu_custom_call.1} parent=27 // pred_fallthru
          _
        %v202 = vld [vmem:[%s169] sm:$0xff]
        %v203 = vld [vmem:[#allocation7] sm:$0xff]
        %v204 = vld [vmem:[#allocation7 + $0x8] sm:$0xff]
        %205 = vmatprep.subr.mxu0 0.0
        %206 = vmatpush1.xpose.msra.mxu0 %v203
        %207 = vmatprep.subr.mxu0 0.0
        %208 = vmatpush1.xpose.msra.mxu0 %v204
        %209 = vmatprep.subr.mxu0 0.0
        %210 = vmatpush1.xpose.msra.mxu0 0.0
        %211 = vmatprep.subr.mxu0 0.0
        %212 = vmatpush1.xpose.msra.mxu0 0.0
        %213 = vmatprep.subr.mxu0 0.0
        %214 = vmatpush1.xpose.msra.mxu0 0.0
        %215 = vmatprep.subr.mxu0 0.0
        %216 = vmatpush1.xpose.msra.mxu0 0.0
        %217 = vmatprep.subr.mxu0 0.0
        %218 = vmatpush1.xpose.msra.mxu0 0.0
        %219 = vmatprep.subr.mxu0 0.0
        %220 = vmatpush1.xpose.msra.mxu0 0.0
        %221 = vmatprep.subr.mxu0 0.0
        %222 = vmatpush1.xpose.msra.mxu0 0.0
        %223 = vmatprep.subr.mxu0 0.0
        %224 = vmatpush1.xpose.msra.mxu0 0.0
        %225 = vmatprep.subr.mxu0 0.0
        %226 = vmatpush1.xpose.msra.mxu0 0.0
        %227 = vmatprep.subr.mxu0 0.0
        %228 = vmatpush1.xpose.msra.mxu0 0.0
        %229 = vmatprep.subr.mxu0 0.0
        %230 = vmatpush1.xpose.msra.mxu0 0.0
        %231 = vmatprep.subr.mxu0 0.0
        %232 = vmatpush1.xpose.msra.mxu0 0.0
        %233 = vmatprep.subr.mxu0 0.0
        %234 = vmatpush1.xpose.msra.mxu0 0.0
        %235 = vmatprep.subr.mxu0 0.0
        %236 = vmatpush1.xpose.msra.mxu0 0.0
        %237 = vmatprep.subr.mxu0 0.0
        %238 = vmatpush1.xpose.msra.mxu0 0.0
        %239 = vmatprep.subr.mxu0 0.0
        %240 = vmatpush1.xpose.msra.mxu0 0.0
        %241 = vmatprep.subr.mxu0 0.0
        %242 = vmatpush1.xpose.msra.mxu0 0.0
        %243 = vmatprep.subr.mxu0 0.0
        %244 = vmatpush1.xpose.msra.mxu0 0.0
        %245 = vmatprep.subr.mxu0 0.0
        %246 = vmatpush1.xpose.msra.mxu0 0.0
        %247 = vmatprep.subr.mxu0 0.0
        %248 = vmatpush1.xpose.msra.mxu0 0.0
        %249 = vmatprep.subr.mxu0 0.0
        %250 = vmatpush1.xpose.msra.mxu0 0.0
        %251 = vmatprep.subr.mxu0 0.0
        %252 = vmatpush1.xpose.msra.mxu0 0.0
        %253 = vmatprep.subr.mxu0 0.0
        %254 = vmatpush1.xpose.msra.mxu0 0.0
        %255 = vmatprep.subr.mxu0 0.0
        %256 = vmatpush1.xpose.msra.mxu0 0.0
        %257 = vmatprep.subr.mxu0 0.0
        %258 = vmatpush1.xpose.msra.mxu0 0.0
        %259 = vmatprep.subr.mxu0 0.0
        %260 = vmatpush1.xpose.msra.mxu0 0.0
        %261 = vmatprep.subr.mxu0 0.0
        %262 = vmatpush1.xpose.msra.mxu0 0.0
        %263 = vmatprep.subr.mxu0 0.0
        %264 = vmatpush1.xpose.msra.mxu0 0.0
        %265 = vmatprep.subr.mxu0 0.0
        %266 = vmatpush1.xpose.msra.mxu0 0.0
        %267 = vmatprep.subr.mxu0 0.0
        %268 = vmatpush1.xpose.msra.mxu0 0.0
        %269 = vmatprep.mubr.f32.mxu0 0.0
        %270 = vmatmul.mubr.f32.gmra.mrb[0].mxu0 %v202
        %v271 = vpop.f32.mrb[0].mxu0
        %v272 = vadd.f32 0.0, %v271
        %v273 = vpop.f32.mrb[0].mxu0
        %274 = vdwg.mxu0
        %s275 = smul.u32 %s24, 8
        %s276 = smul.u32 %s25, 16
        %s277 = sadd.s32 %s275, 8
        %p278 = scmp.lt.s32.totalorder %s276, %s277
        %s279 = sadd.s32 %s276, 16
        %p280 = scmp.gt.s32.totalorder %s279, %s275
        %p281 = pnand %p278, %p280
        %p282 = pneg %p281
        // Predicated region
        $region41: #{tpu_custom_call.1} parent=27 // pred_check
          _
        $region42: #{tpu_custom_call.1} parent=27 // pred_check_branch
          %284 = sbr.rel (%p281) target = $region44
        $region43: #{tpu_custom_call.1} parent=27 // pred_region
          %v285 = vlaneseq
          %v286 = vshrl.u32 %v285, 7
          %v287 = vstv %s275
          %v288 = vadd.s32 %v286, %v287
          %v289 = vlaneseq
          %v290 = vand.u32 %v289, 127
          %v291 = vstv %s276
          %v292 = vadd.s32 %v290, %v291
          %vm293 = vcmp.eq.s32.totalorder %v288, %v292
          %v294 = vsel %vm293, -1e+30, %v272
          %v295 = vld [vmem:[#allocation2] sm:$0xff]
          %vm296 = vcmask 130048
          %v297 = vsel %vm296, %v294, -inf
          %298 = vmax.xlane.f32.xlu0 %v297
          %v299 = vpop.xlane.xlu0 %298
          %v300 = vmax.f32 %v295, %v299
          %302 = vset.pattern.permute.xlu0 0
          %303 = vperm.xlu0 %302, %v300
          %v304 = vpop.permute.xlu0 %303
          %v306 = vsub.f32 %v294, %v304
          %v307 = vmul.f32 %v306, 1.442695
          %v308 = vpow.pop %v307
          %v309 = vld [vmem:[#allocation3] sm:$0xff]
          %v310 = vsub.f32 %v295, %v300
          %v311 = vmul.f32 %v310, 1.442695
          %v312 = vpow.pop %v311
          %v313 = vmul.f32 %v309, %v312
          %v314 = vsel %vm296, %v308, 0.0
          %315 = vadd.xlane.f32.xlu0 %v314
          %v316 = vpop.xlane.xlu0 %315
          %v317 = vadd.f32 %v313, %v316
          %vm318 = vcmask 7168
          %319 = vst.msk [vmem:[#allocation3] sm:$0xff] %vm318, %v317
          %320 = vst.msk [vmem:[#allocation2] sm:$0xff] %vm318, %v300
        $region44: #{tpu_custom_call.1} parent=27 // pred_fallthru
          _
        %p321 = pneg %p282
        // Predicated region
        $region45: #{tpu_custom_call.1} parent=27 // pred_check
          _
        $region46: #{tpu_custom_call.1} parent=27 // pred_check_branch
          %323 = sbr.rel (%p282) target = $region48
        $region47: #{tpu_custom_call.1} parent=27 // pred_region
          %v324 = vld [vmem:[#allocation2] sm:$0xff]
          %vm325 = vcmask 130048
          %v326 = vsel %vm325, %v272, -inf
          %327 = vmax.xlane.f32.xlu0 %v326
          %v328 = vpop.xlane.xlu0 %327
          %v329 = vmax.f32 %v324, %v328
          %331 = vset.pattern.permute.xlu0 0
          %332 = vperm.xlu0 %331, %v329
          %v333 = vpop.permute.xlu0 %332
          %v335 = vsub.f32 %v272, %v333
          %v336 = vmul.f32 %v335, 1.442695
          %v337 = vpow.pop %v336
          %v338 = vld [vmem:[#allocation3] sm:$0xff]
          %v339 = vsub.f32 %v324, %v329
          %v340 = vmul.f32 %v339, 1.442695
          %v341 = vpow.pop %v340
          %v342 = vmul.f32 %v338, %v341
          %v343 = vsel %vm325, %v337, 0.0
          %344 = vadd.xlane.f32.xlu0 %v343
          %v345 = vpop.xlane.xlu0 %344
          %v346 = vadd.f32 %v342, %v345
          %vm347 = vcmask 7168
          %348 = vst.msk [vmem:[#allocation3] sm:$0xff] %vm347, %v346
          %349 = vst.msk [vmem:[#allocation2] sm:$0xff] %vm347, %v329
        $region48: #{tpu_custom_call.1} parent=27 // pred_fallthru
          _
        // Predicated region
        $region49: #{tpu_custom_call.1} parent=27 // pred_check
          %p350 = pneg %p195
        $region50: #{tpu_custom_call.1} parent=27 // pred_check_branch
          %352 = sbr.rel (%p350) target = $region52
        $region51: #{tpu_custom_call.1} parent=27 // pred_region
          %v353 = vld [vmem:[#allocation2] sm:$0xff]
          %v354 = vld [vmem:[#allocation3] sm:$0xff]
          %v355 = vlog2.pop %v354
          %v356 = vmul.f32 %v355, 0.6931472
          %v357 = vadd.f32 %v353, %v356
          %359 = vset.pattern.permute.xlu0 0
          %360 = vperm.xlu0 %359, %v357
          %v361 = vpop.permute.xlu0 %360
          %363 = vst [vmem:[%s193] sm:$0xff] %v361
        $region52: #{tpu_custom_call.1} parent=27 // pred_fallthru
          _
        %s364 = sand.u32 %s92, 1
        %s365 = scalar_lea.sflag [#allocation6], %s364
        %s366 = sand.u32 %s92, 1
        %s367 = smul.addr %s366, 8
        %s368 = scalar_lea.vmem [#allocation9], %s367
        // Predicated region
        $region53: #{tpu_custom_call.1} parent=27 // pred_check
          %p369 = pneg %p102
        $region54: #{tpu_custom_call.1} parent=27 // pred_check_branch
          %371 = sbr.rel (%p369) target = $region56
        $region55: #{tpu_custom_call.1} parent=27 // pred_region
          %s373 = ssub.s32 128, 128
          %374 = vsyncadd %s365, %s373
          %s375 = smul.addr %s24, 128
          %s376 = scalar_lea.hbm %s2, %s375
          %s378 = sshll.u32 %s368, 4
          %s379 = int_to_ptr.vmem [resolvable:$true] %s378
          %381 = dma.vmem_to_hbm [thread:$0]  %s379, 128, %s376, %s365
        $region56: #{tpu_custom_call.1} parent=27 // pred_fallthru
          _
      $region28: #{tpu_custom_call.1} parent=5 // pred_fallthru
        _
      %p382 = scmp.le.s32.totalorder 2, %s15
      // Predicated region
      $region57: #{tpu_custom_call.1} parent=5 // pred_check
        %p383 = pneg %p382
      $region58: #{tpu_custom_call.1} parent=5 // pred_check_branch
        %385 = sbr.rel (%p383) target = $region60
      $region59: #{tpu_custom_call.1} parent=5 // pred_region
        %s386 = ssub.s32 %s15, 2
        // Predicated region
        $region61: #{tpu_custom_call.1} parent=59 // pred_check
          %p387 = pneg %p108
        $region62: #{tpu_custom_call.1} parent=59 // pred_check_branch
          %389 = sbr.rel (%p387) target = $region64
        $region63: #{tpu_custom_call.1} parent=59 // pred_region
          %s390 = sand.u32 %s93, 1
          %s391 = scalar_lea.sflag [#allocation6], %s390
          %s392 = sand.u32 %s93, 1
          %s393 = smul.addr %s392, 8
          %s394 = scalar_lea.vmem [#allocation9], %s393
          %395 = dma.done %s391, 128
        $region64: #{tpu_custom_call.1} parent=59 // pred_fallthru
          _
      $region60: #{tpu_custom_call.1} parent=5 // pred_fallthru
        _
    $region6: #{tpu_custom_call.1} parent=1 // loop_footer
      %s19 = sadd.s32 1, %s15
    $region7: #{tpu_custom_call.1} parent=1 // loop_footer_branch
      %14 = sbr.rel target = $region3
    $region8: #{tpu_custom_call.1} parent=1 // loop_exit
      _
    %396 = vsyncpa [#allocation5], 1
    %s397 = scalar_lea.sflag [#allocation5], 1
    %398 = vsyncpa %s397, 1
    %399 = vsyncpa [#allocation8], 1
    %400 = vsyncpa [#allocation6], 1
    %s401 = scalar_lea.sflag [#allocation6], 1
    %402 = vsyncpa %s401, 1

</llo_original>
